<compile_context>
chip_gen: v7x
topology: tpu7x:2x2x1
jax: 0.10.0
libtpu: 0.0.40
codegen_flags: <defaults>
</compile_context>

<pallas_src>
import functools

import jax
import jax.numpy as jnp
from jax import lax
from jax.experimental import pallas as pl
from jax.experimental.pallas import tpu as pltpu

ALPHA = 1.0
GAMMA = 2.0
_LANE = 128
_SUBLANE = 8


def _focal_loss_kernel(x_ref, t_ref, out_ref, *,
                       alpha, gamma, tile_rows, steps,
                       rows, lane_pad, needs_mask):
    s = pl.program_id(0)
    k = pl.program_id(1)

    @pl.when(k == 0)
    def _():
        out_ref[...] = jnp.zeros_like(out_ref)

    # Native-dtype DMA, f32 compute (v5e VPU/EUP have no bf16 path).
    x = x_ref[...].astype(jnp.float32)
    t = t_ref[...].astype(jnp.float32)

    # Numerically stable BCE-with-logits (== F.binary_cross_entropy_with_logits):
    #   bce = max(x, 0) - x*t + log1p(exp(-|x|))
    bce = jnp.maximum(x, 0.0) - x * t + jnp.log1p(jnp.exp(-jnp.abs(x)))
    # pt = exp(-bce) keeps soft (non-binary) targets exactly equivalent to torch.
    pt = jnp.exp(-bce)
    one_minus_pt = 1.0 - pt
    if float(gamma) == 2.0:
        # Explicit square: a float-exponent pow lowers to exp(g*log(.)).
        mod = one_minus_pt * one_minus_pt
    elif float(gamma) == 1.0:
        mod = one_minus_pt
    else:
        mod = one_minus_pt ** gamma
    f_loss = mod * bce
    if float(alpha) != 1.0:          # skip the VALU multiply when alpha == 1
        f_loss = alpha * f_loss

    if needs_mask:
        # Zero out-of-range contributions:
        #   * stale-VMEM rows of a partial trailing block,
        #   * the (<128-element) lane padding of the final row,
        #   * whole "ghost" tiles of the last shard (their DMA index is clamped
        #     in the index_map; the mask kills their contribution here).
        # int32 row indices are fine for n_total < 2^38 elements.
        row0 = (s * steps + k) * tile_rows          # logical row offset of tile
        gr = row0 + lax.broadcasted_iota(jnp.int32, f_loss.shape, 0)
        if lane_pad:
            lane = lax.broadcasted_iota(jnp.int32, f_loss.shape, 1)
            valid = (gr < rows - 1) | ((gr == rows - 1) & (lane < _LANE - lane_pad))
        else:
            valid = gr < rows
        f_loss = jnp.where(valid, f_loss, 0.0)

    # Pure-VPU accumulation into the resident (8,128) output block; the single
    # cross-lane XLU reduce and 1/n scale happen once in the wrapper.  The
    # reshape splits the sublane-major dim by multiples of 8, so it is
    # (8,128)-tile aligned and stays a free view.
    out_ref[...] += jnp.sum(
        f_loss.reshape(tile_rows // _SUBLANE, _SUBLANE, _LANE), axis=0)


def _num_tensorcores():
    """Best-effort TensorCore count (2 on v7x-style parts, 1 on v5e/v6e)."""
    try:
        info = pltpu.get_tpu_info()
        for name in ("num_cores", "core_count", "num_tensorcores",
                     "tensorcores_per_chip", "cores_per_chip"):
            v = getattr(info, name, None)
            if isinstance(v, int) and v > 0:
                return v
    except Exception:
        pass
    try:
        v = getattr(jax.devices()[0], "num_cores", None)
        if isinstance(v, int) and v > 0:
            return v
    except Exception:
        pass
    return 1


def focal_loss(inputs, targets, *, alpha=ALPHA, gamma=GAMMA, max_tile_rows=1024):
    """Mean focal loss over all elements (logits=True, reduce=True).

    Inputs/targets are DMA'd in their native dtype and upcast to f32 inside the
    kernel, so bf16 logits / int8 or bf16 targets cut HBM traffic directly.
    """
    assert inputs.shape == targets.shape
    n_total = inputs.size
    rows = pl.cdiv(n_total, _LANE)
    lane_pad = rows * _LANE - n_total

    x_flat = inputs.reshape(-1)
    t_flat = targets.reshape(-1)
    if lane_pad:
        # Only when n_total % 128 != 0: pad by <128 elements so the flat array
        # reshapes to a lane-dense (rows, 128) slab; padded elements are masked
        # to zero inside the kernel.
        # TODO(synk): this pad still rewrites the array once in HBM for
        # non-128-multiple sizes; a manual-DMA 1-D path would avoid it.
        x_flat = jnp.pad(x_flat, (0, lane_pad))
        t_flat = jnp.pad(t_flat, (0, lane_pad))
    x2d = x_flat.reshape(rows, _LANE)   # contiguous reshape: no data movement
    t2d = t_flat.reshape(rows, _LANE)

    # Largest multiple-of-8 tile <= max_tile_rows; no exact-divisor requirement
    # (the partial trailing block is masked in-kernel).  1024x128 f32 blocks
    # keep the double-buffered pipeline footprint ~2 MiB: far under the scoped
    # VMEM default on every generation (v5e 16 MiB ... v7x 32 MiB).
    tile_rows = min(max_tile_rows, -(-rows // _SUBLANE) * _SUBLANE)
    tile_rows = max(_SUBLANE, tile_rows - tile_rows % _SUBLANE)
    total_tiles = pl.cdiv(rows, tile_rows)

    # Shard the row range across TensorCores only when each core gets real work
    # (v7x has 2 TCs and 3.2 TB/s shared HBM; 1-TC v5e/v6e collapse to 1 shard).
    num_cores = _num_tensorcores()
    num_shards = num_cores if (num_cores > 1 and total_tiles >= 2 * num_cores) else 1
    steps = pl.cdiv(total_tiles, num_shards)

    needs_mask = (bool(lane_pad)
                  or (rows % tile_rows != 0)
                  or (num_shards * steps != total_tiles))

    last_tile = total_tiles - 1
    if num_shards * steps != total_tiles:
        # The last shard has "ghost" steps; clamp their DMA to the last real
        # tile (the in-kernel mask zeroes their contribution).
        def in_map(s, k):
            return (jnp.minimum(s * steps + k, last_tile), 0)
    else:
        def in_map(s, k):
            return (s * steps + k, 0)

    kernel = functools.partial(
        _focal_loss_kernel,
        alpha=float(alpha), gamma=float(gamma),
        tile_rows=tile_rows, steps=steps,
        rows=rows, lane_pad=lane_pad, needs_mask=needs_mask)

    partials = pl.pallas_call(
        kernel,
        out_shape=jax.ShapeDtypeStruct((num_shards, _SUBLANE, _LANE), jnp.float32),
        grid_spec=pltpu.PrefetchScalarGridSpec(
            num_scalar_prefetch=0,
            grid=(num_shards, steps),
            in_specs=[
                pl.BlockSpec((tile_rows, _LANE), in_map),
                pl.BlockSpec((tile_rows, _LANE), in_map),
            ],
            # Full (8,128) tile per shard -> unmasked, tile-aligned stores.
            out_specs=pl.BlockSpec((None, _SUBLANE, _LANE), lambda s, k: (s, 0, 0)),
        ),
        compiler_params=pltpu.CompilerParams(
            dimension_semantics=("parallel", "arbitrary"),
        ),
    )(x2d, t2d)

    # Single cross-lane reduce + 1/n scale on a tiny (num_shards,8,128) array.
    # Note: each lane slot accumulates `steps` f32 partials; for multi-billion
    # element inputs split shards further to bound accumulation error.
    return jnp.sum(partials) * (1.0 / float(n_total))


def focal_loss_ref(inputs, targets, alpha=ALPHA, gamma=GAMMA):
    x = inputs.astype(jnp.float32)
    t = targets.astype(jnp.float32)
    bce = jnp.maximum(x, 0.0) - x * t + jnp.log1p(jnp.exp(-jnp.abs(x)))
    pt = jnp.exp(-bce)
    return jnp.mean(alpha * (1.0 - pt) ** gamma * bce)


if __name__ == "__main__":
    key = jax.random.PRNGKey(0)

    # 1) NCHW-shaped logits and binary targets (module's default forward path).
    k1, k2, k3, k4, k5, k6 = jax.random.split(key, 6)
    x = jax.random.normal(k1, (2, 4, 16, 16), dtype=jnp.float32)
    t = (jax.random.uniform(k2, (2, 4, 16, 16)) > 0.5).astype(jnp.float32)
    out = jax.block_until_ready(focal_loss(x, t))
    ref = focal_loss_ref(x, t)
    assert jnp.allclose(out, ref, atol=1e-5, rtol=1e-5), (out, ref)

    # 2) Ragged size (not a multiple of 128): exercises lane-pad + row masking.
    x2 = jax.random.normal(k3, (2, 3, 7, 11), dtype=jnp.float32)
    t2 = (jax.random.uniform(k4, (2, 3, 7, 11)) > 0.5).astype(jnp.float32)
    out2 = jax.block_until_ready(focal_loss(x2, t2))
    ref2 = focal_loss_ref(x2, t2)
    assert jnp.allclose(out2, ref2, atol=1e-5, rtol=1e-5), (out2, ref2)

    # 3) Multi-tile reduction with a partial trailing block (small tile forced).
    x3 = jax.random.normal(k5, (2, 4, 20, 64), dtype=jnp.float32)
    t3 = (jax.random.uniform(k6, (2, 4, 20, 64)) > 0.5).astype(jnp.float32)
    out3 = jax.block_until_ready(focal_loss(x3, t3, max_tile_rows=32))
    ref3 = focal_loss_ref(x3, t3)
    assert jnp.allclose(out3, ref3, atol=1e-5, rtol=1e-5), (out3, ref3)

    print("KERNEL_OK")
</pallas_src>

<mosaic_0001>
module attributes {stable_mosaic.version = 11 : i64} {
  func.func @_focal_loss_kernel(%arg0: i32, %arg1: i32, %arg2: memref<16x128xf32, #tpu.memory_space<vmem>>, %arg3: memref<16x128xf32, #tpu.memory_space<vmem>>, %arg4: memref<1x8x128xf32, #tpu.memory_space<vmem>>) attributes {dimension_semantics = [#tpu.dimension_semantics<parallel>, #tpu.dimension_semantics<arbitrary>], iteration_bounds = array<i64: 1, 1>, scalar_prefetch = 0 : i64, scratch_operands = 0 : i64, tpu.core_type = #tpu.core_type<tc>, window_params = [{transform_indices = @transform_0, window_bounds = array<i64: 16, 128>}, {transform_indices = @transform_1, window_bounds = array<i64: 16, 128>}, {transform_indices = @transform_2, window_bounds = array<i64: 1, 8, 128>}]} {
    %c0_i32 = arith.constant 0 : i32
    %0 = arith.cmpi eq, %arg1, %c0_i32 : i32
    %1 = arith.extui %0 : i1 to i32
    %c0_i32_0 = arith.constant 0 : i32
    %2 = arith.cmpi ne, %1, %c0_i32_0 : i32
    scf.if %2 {
      %cst_14 = arith.constant 0.000000e+00 : f32
      %30 = vector.broadcast %cst_14 : f32 to vector<8x128xf32>
      %c0_15 = arith.constant 0 : index
      %c0_16 = arith.constant 0 : index
      %c0_17 = arith.constant 0 : index
      %31 = vector.load %arg4[%c0_15, %c0_16, %c0_17] : memref<1x8x128xf32, #tpu.memory_space<vmem>>, vector<1x8x128xf32>
      %32 = vector.shape_cast %31 : vector<1x8x128xf32> to vector<8x128xf32>
      %33 = vector.shape_cast %30 : vector<8x128xf32> to vector<1x8x128xf32>
      tpu.vector_store %arg4[%c0_15, %c0_16, %c0_17], %33 {strides = array<i32>} : memref<1x8x128xf32, #tpu.memory_space<vmem>>, vector<1x8x128xf32>,
    } else {
    }
    %c0 = arith.constant 0 : index
    %c0_1 = arith.constant 0 : index
    %3 = vector.load %arg2[%c0, %c0_1] : memref<16x128xf32, #tpu.memory_space<vmem>>, vector<16x128xf32>
    %c0_2 = arith.constant 0 : index
    %c0_3 = arith.constant 0 : index
    %4 = vector.load %arg3[%c0_2, %c0_3] : memref<16x128xf32, #tpu.memory_space<vmem>>, vector<16x128xf32>
    %cst = arith.constant 0.000000e+00 : f32
    %5 = vector.broadcast %cst : f32 to vector<16x128xf32>
    %6 = arith.maximumf %3, %5 : vector<16x128xf32>
    %7 = arith.mulf %3, %4 : vector<16x128xf32>
    %8 = arith.subf %6, %7 : vector<16x128xf32>
    %9 = math.absf %3 : vector<16x128xf32>
    %cst_4 = arith.constant 0.000000e+00 : f32
    %10 = vector.broadcast %cst_4 : f32 to vector<16x128xf32>
    %11 = arith.subf %10, %9 : vector<16x128xf32>
    %12 = math.exp %11 : vector<16x128xf32>
    %13 = math.log1p %12 : vector<16x128xf32>
    %14 = arith.addf %8, %13 : vector<16x128xf32>
    %cst_5 = arith.constant 0.000000e+00 : f32
    %15 = vector.broadcast %cst_5 : f32 to vector<16x128xf32>
    %16 = arith.subf %15, %14 : vector<16x128xf32>
    %17 = math.exp %16 : vector<16x128xf32>
    %cst_6 = arith.constant 1.000000e+00 : f32
    %18 = vector.broadcast %cst_6 : f32 to vector<16x128xf32>
    %19 = arith.subf %18, %17 : vector<16x128xf32>
    %20 = arith.mulf %19, %19 : vector<16x128xf32>
    %21 = arith.mulf %20, %14 : vector<16x128xf32>
    %c0_7 = arith.constant 0 : index
    %c0_8 = arith.constant 0 : index
    %c0_9 = arith.constant 0 : index
    %22 = vector.load %arg4[%c0_7, %c0_8, %c0_9] : memref<1x8x128xf32, #tpu.memory_space<vmem>>, vector<1x8x128xf32>
    %23 = vector.shape_cast %22 : vector<1x8x128xf32> to vector<8x128xf32>
    %24 = vector.shape_cast %21 : vector<16x128xf32> to vector<2x8x128xf32>
    %cst_10 = arith.constant dense<0.000000e+00> : vector<8x128xf32>
    %25 = vector.multi_reduction <add>, %24, %cst_10 [0] : vector<2x8x128xf32> to vector<8x128xf32>
    %26 = arith.addf %23, %25 : vector<8x128xf32>
    %c0_11 = arith.constant 0 : index
    %c0_12 = arith.constant 0 : index
    %c0_13 = arith.constant 0 : index
    %27 = vector.load %arg4[%c0_11, %c0_12, %c0_13] : memref<1x8x128xf32, #tpu.memory_space<vmem>>, vector<1x8x128xf32>
    %28 = vector.shape_cast %27 : vector<1x8x128xf32> to vector<8x128xf32>
    %29 = vector.shape_cast %26 : vector<8x128xf32> to vector<1x8x128xf32>
    tpu.vector_store %arg4[%c0_11, %c0_12, %c0_13], %29 {strides = array<i32>} : memref<1x8x128xf32, #tpu.memory_space<vmem>>, vector<1x8x128xf32>,
    return
  }
  func.func @transform_0(%arg0: i32, %arg1: i32) -> (i32, i32) {
    %c1_i32 = arith.constant 1 : i32
    %0 = arith.muli %arg0, %c1_i32 : i32
    %1 = arith.addi %0, %arg1 : i32
    %c0_i32 = arith.constant 0 : i32
    %c0_i32_0 = arith.constant 0 : i32
    return %1, %c0_i32 : i32, i32
  }
  func.func @transform_1(%arg0: i32, %arg1: i32) -> (i32, i32) {
    %c1_i32 = arith.constant 1 : i32
    %0 = arith.muli %arg0, %c1_i32 : i32
    %1 = arith.addi %0, %arg1 : i32
    %c0_i32 = arith.constant 0 : i32
    %c0_i32_0 = arith.constant 0 : i32
    return %1, %c0_i32 : i32, i32
  }
  func.func @transform_2(%arg0: i32, %arg1: i32) -> (i32, i32, i32) {
    %c0_i32 = arith.constant 0 : i32
    %c0_i32_0 = arith.constant 0 : i32
    %c0_i32_1 = arith.constant 0 : i32
    return %arg0, %c0_i32, %c0_i32_0 : i32, i32, i32
  }
}

</mosaic_0001>

<llo_original>
// kernel: tpu_custom_call.1
$region0: #{tpu_custom_call.1}
  #allocation0 [shape = 'u32[]', space=smem, size = 0x4, offset = 0x4, fixed_abs, tag = 'smem constant byte address 0x4 - core index']
  #allocation1 [shape = 'u32[144,128]{1,0:T(1,128)}', space=vmem, size = 0x12000, scoped, tag = 'internal scratch']
  %s0 = inlined_call_operand.hbm [shape: f32[16,128], index: 0, kind: input, shape index: {}]
  %s1 = inlined_call_operand.hbm [shape: f32[16,128], index: 1, kind: input, shape index: {}]
  %s2 = inlined_call_operand.hbm [shape: f32[1,8,128], index: 2, kind: output, shape index: {}]
  %s3 = sld [smem:[#allocation0]]
  $region30: #{tpu_custom_call.1} parent=0
    _
  %s5 = ssub.s32 1, %s3
  %s6 = scalar_select 0, %s5, %s3
  $region1: #{tpu_custom_call.1} parent=0
    #allocation2 [shape = 'u8[8192]{0}', space=vmem, size = 0x2000, scoped, tag = 'input window, operand 0, single buffered']
    #allocation3 [shape = 's32[1]{0}', space=sflag, size = 0x4, scoped, tag = 'scoped memory for tpu_custom_call.1']
    #allocation4 [shape = 's32[1]{0}', space=sflag, size = 0x4, scoped, tag = 'scoped memory for tpu_custom_call.1']
    #allocation5 [shape = 'u8[8192]{0}', space=vmem, size = 0x2000, scoped, tag = 'input window, operand 1, single buffered']
    #allocation6 [shape = 's32[1]{0}', space=sflag, size = 0x4, scoped, tag = 'scoped memory for tpu_custom_call.1']
    #allocation7 [shape = 'u8[4096]{0}', space=vmem, size = 0x1000, scoped, tag = 'output window, operand 0, single buffered']
    %7 = vsyncpa [#allocation3], 0
    %8 = vsyncpa [#allocation6], 0
    %9 = vsyncpa [#allocation4], 0
    // Predicated region
    $region2: #{tpu_custom_call.1} parent=1 // pred_check
      _
    $region3: #{tpu_custom_call.1} parent=1 // pred_check_branch
      %11 = sbr.rel (0) target = $region5
    $region4: #{tpu_custom_call.1} parent=1 // pred_region
      %s12 = sadd.s32 0, 0
      %s13 = smul.u32 2, %s12
      %s15 = ssub.s32 256, 256
      %16 = vsyncadd [#allocation3], %s15
      %s17 = smul.addr %s13, 128
      %s18 = scalar_lea.hbm %s0, %s17
      %s19 = sshll.u32 [#allocation2], 4
      %s20 = int_to_ptr.vmem [resolvable:$true] %s19
      %25 = dma.hbm_to_vmem [thread:$0]  %s18, 256, %s20, [#allocation3], 128, 128, 8
    $region5: #{tpu_custom_call.1} parent=1 // pred_fallthru
      _
    // Predicated region
    $region6: #{tpu_custom_call.1} parent=1 // pred_check
      _
    $region7: #{tpu_custom_call.1} parent=1 // pred_check_branch
      %27 = sbr.rel (0) target = $region9
    $region8: #{tpu_custom_call.1} parent=1 // pred_region
      %s28 = sadd.s32 0, 0
      %s29 = smul.u32 2, %s28
      %s31 = ssub.s32 256, 256
      %32 = vsyncadd [#allocation6], %s31
      %s33 = smul.addr %s29, 128
      %s34 = scalar_lea.hbm %s1, %s33
      %s35 = sshll.u32 [#allocation5], 4
      %s36 = int_to_ptr.vmem [resolvable:$true] %s35
      %41 = dma.hbm_to_vmem [thread:$0]  %s34, 256, %s36, [#allocation6], 128, 128, 8
    $region9: #{tpu_custom_call.1} parent=1 // pred_fallthru
      _
    // Predicated region
    $region10: #{tpu_custom_call.1} parent=1 // pred_check
      _
    $region11: #{tpu_custom_call.1} parent=1 // pred_check_branch
      %43 = sbr.rel (0) target = $region13
    $region12: #{tpu_custom_call.1} parent=1 // pred_region
      %44 = dma.done [#allocation3], 256
    $region13: #{tpu_custom_call.1} parent=1 // pred_fallthru
      _
    // Predicated region
    $region14: #{tpu_custom_call.1} parent=1 // pred_check
      _
    $region15: #{tpu_custom_call.1} parent=1 // pred_check_branch
      %46 = sbr.rel (0) target = $region17
    $region16: #{tpu_custom_call.1} parent=1 // pred_region
      %47 = dma.done [#allocation6], 256
    $region17: #{tpu_custom_call.1} parent=1 // pred_fallthru
      _
    %s48 = sadd.s32 0, 0
    %s49 = smul.u32 2, %s48
    %s50 = sadd.s32 0, 0
    %s51 = smul.u32 2, %s50
    %p52 = scmp.eq.s32.totalorder 0, 0
    // Predicated region
    $region18: #{tpu_custom_call.1} parent=1 // pred_check
      %p53 = pneg %p52
    $region19: #{tpu_custom_call.1} parent=1 // pred_check_branch
      %55 = sbr.rel (%p53) target = $region21
    $region20: #{tpu_custom_call.1} parent=1 // pred_region
      %56 = vst [vmem:[#allocation7] sm:$0xff] 0.0
    $region21: #{tpu_custom_call.1} parent=1 // pred_fallthru
      _
    %v57 = vld [vmem:[#allocation2] sm:$0xff]
    %v58 = vld [vmem:[#allocation2 + $0x8] sm:$0xff]
    %v59 = vld [vmem:[#allocation5] sm:$0xff]
    %v60 = vld [vmem:[#allocation5 + $0x8] sm:$0xff]
    %v61 = vmax.f32 %v57, 0.0
    %v62 = vmax.f32 %v58, 0.0
    %v63 = vmul.f32 %v57, %v59
    %v64 = vmul.f32 %v58, %v60
    %v65 = vsub.f32 %v61, %v63
    %v66 = vsub.f32 %v62, %v64
    %v67 = vand.u32 2147483647, %v57
    %v68 = vand.u32 2147483647, %v58
    %v69 = vsub.f32 0.0, %v67
    %v70 = vsub.f32 0.0, %v68
    %v71 = vmul.f32 %v69, 1.442695
    %v72 = vpow.pop %v71
    %v73 = vmul.f32 %v70, 1.442695
    %v74 = vpow.pop %v73
    %v75 = vadd.f32 %v72, 1.0
    %v76 = vlog2.pop %v75
    %v77 = vmul.f32 %v76, 0.6931472
    %v78 = vmul.f32 -0.5, %v72
    %v79 = vadd.f32 %v78, 1.0
    %v80 = vmul.f32 %v79, %v72
    %v81 = vand.u32 2147483647, %v72
    %vm82 = vcmp.lt.f32.partialorder %v81, 0.0004427343
    %v83 = vsel %vm82, %v80, %v77
    %v84 = vadd.f32 %v74, 1.0
    %v85 = vlog2.pop %v84
    %v86 = vmul.f32 %v85, 0.6931472
    %v87 = vmul.f32 -0.5, %v74
    %v88 = vadd.f32 %v87, 1.0
    %v89 = vmul.f32 %v88, %v74
    %v90 = vand.u32 2147483647, %v74
    %vm91 = vcmp.lt.f32.partialorder %v90, 0.0004427343
    %v92 = vsel %vm91, %v89, %v86
    %v93 = vadd.f32 %v65, %v83
    %v94 = vadd.f32 %v66, %v92
    %v95 = vsub.f32 0.0, %v93
    %v96 = vsub.f32 0.0, %v94
    %v97 = vmul.f32 %v95, 1.442695
    %v98 = vpow.pop %v97
    %v99 = vmul.f32 %v96, 1.442695
    %v100 = vpow.pop %v99
    %v101 = vsub.f32 1.0, %v98
    %v102 = vsub.f32 1.0, %v100
    %v103 = vmul.f32 %v101, %v101
    %v104 = vmul.f32 %v102, %v102
    %v105 = vmul.f32 %v103, %v93
    %v106 = vmul.f32 %v104, %v94
    %v107 = vld [vmem:[#allocation7] sm:$0xff]
    %v108 = vadd.f32 %v105, %v106
    %v109 = vadd.f32 %v107, %v108
    %110 = vst [vmem:[#allocation7] sm:$0xff] %v109
    // Predicated region
    $region22: #{tpu_custom_call.1} parent=1 // pred_check
      _
    $region23: #{tpu_custom_call.1} parent=1 // pred_check_branch
      %112 = sbr.rel (0) target = $region25
    $region24: #{tpu_custom_call.1} parent=1 // pred_region
      %s114 = ssub.s32 128, 128
      %115 = vsyncadd [#allocation4], %s114
      %s117 = sshll.u32 [#allocation7], 4
      %s118 = int_to_ptr.vmem [resolvable:$true] %s117
      %120 = dma.vmem_to_hbm [thread:$0]  %s118, 128, %s2, [#allocation4]
    $region25: #{tpu_custom_call.1} parent=1 // pred_fallthru
      _
    // Predicated region
    $region26: #{tpu_custom_call.1} parent=1 // pred_check
      _
    $region27: #{tpu_custom_call.1} parent=1 // pred_check_branch
      %122 = sbr.rel (0) target = $region29
    $region28: #{tpu_custom_call.1} parent=1 // pred_region
      %123 = dma.done [#allocation4], 128
    $region29: #{tpu_custom_call.1} parent=1 // pred_fallthru
      _
    %124 = vsyncpa [#allocation3], 1
    %125 = vsyncpa [#allocation6], 1
    %126 = vsyncpa [#allocation4], 1

</llo_original>
